<compile_context>
chip_gen: v6e
topology: v6e:2x2x1
jax: 0.10.0
libtpu: 0.0.40
codegen_flags: <defaults>
</compile_context>

<pallas_src>
import jax
import jax.numpy as jnp
from jax.experimental import pallas as pl
from jax.experimental.pallas import tpu as pltpu


def _qcfs_kernel(T, s_ref, x_ref, o_ref):
    # s_ref: SMEM (2,) f32 = [T / v_threshold, v_threshold / T]
    scale = s_ref[0]
    inv_scale = s_ref[1]
    x = x_ref[...].astype(jnp.float32)
    y = jnp.floor(x * scale + jnp.float32(0.5))
    y = jnp.clip(y, jnp.float32(0.0), jnp.float32(T))
    o_ref[...] = (y * inv_scale).astype(o_ref.dtype)


def _pick_target_block_bytes():
    # v7x (64 MiB VMEM, ~3.2 TB/s HBM) amortizes per-step overhead better with
    # bigger blocks; v5e/v6e are already <5% overhead at ~4 MiB.
    try:
        cap = getattr(pltpu.get_tpu_info(), "vmem_capacity_bytes", None)
    except Exception:
        cap = None
    if cap is not None and cap <= 96 * 1024 * 1024:
        return 6 * 1024 * 1024      # v7x-class
    return 4 * 1024 * 1024          # v5e / v6e


def _qcfs_pallas_2d(x2d, scales, T):
    rows, lanes = x2d.shape
    dtype = x2d.dtype
    itemsize = jnp.dtype(dtype).itemsize
    # Native sublane packing factor for the I/O dtype.
    sub = {4: 8, 2: 16, 1: 32}.get(itemsize, 8)

    bytes_per_row = lanes * itemsize
    total_bytes = rows * bytes_per_row
    target_bytes = _pick_target_block_bytes()

    max_rows_per_block = max(sub, (target_bytes // bytes_per_row) // sub * sub)

    # Keep >= ~4 grid steps for mid/large tensors (megacore sharding + DMA
    # overlap); tiny tensors stay in a single block (per-step overhead wins).
    min_blocks = 4
    if total_bytes >= (1 << 20) and rows >= min_blocks * sub:
        split_rows = -(-rows // min_blocks)                 # cdiv(rows, 4)
        split_rows = -(-split_rows // sub) * sub            # round up to sub
        desired = min(max_rows_per_block, split_rows)
    else:
        desired = max_rows_per_block

    if desired >= rows:
        block_rows = rows        # full-array block (legal: equals array dims)
    else:
        block_rows = desired     # multiple of sub; ragged final block is masked

    grid = (pl.cdiv(rows, block_rows),)

    n_elems = rows * lanes
    cost = pl.CostEstimate(
        flops=8 * n_elems,
        transcendentals=0,
        bytes_accessed=2 * n_elems * itemsize,
    )

    return pl.pallas_call(
        lambda s_ref, x_ref, o_ref: _qcfs_kernel(T, s_ref, x_ref, o_ref),
        out_shape=jax.ShapeDtypeStruct((rows, lanes), dtype),
        grid_spec=pltpu.PrefetchScalarGridSpec(
            num_scalar_prefetch=0,
            grid=grid,
            in_specs=[
                pl.BlockSpec(memory_space=pltpu.SMEM),               # scales
                pl.BlockSpec((block_rows, lanes), lambda i: (i, 0)),  # x tile
            ],
            out_specs=pl.BlockSpec((block_rows, lanes), lambda i: (i, 0)),
        ),
        compiler_params=pltpu.CompilerParams(
            dimension_semantics=("parallel",),
            vmem_limit_bytes=32 * 1024 * 1024,
        ),
        cost_estimate=cost,
    )(scales, x2d)


def qcfs_forward(x, v_threshold, T):
    """x: array of any shape (e.g. NCHW). Returns same shape/dtype."""
    orig_shape = x.shape
    dtype = x.dtype

    xf = x.reshape(-1)
    n = xf.shape[0]

    vth = jnp.asarray(v_threshold, dtype=jnp.float32)
    t = jnp.float32(T)
    scales = jnp.stack([t / vth, vth / t])   # (2,) f32, computed once

    n_main = (n // 128) * 128
    tail = n - n_main

    out_main = None
    if n_main > 0:
        x_main = xf if tail == 0 else xf[:n_main]
        # Widest lane-dense width (multiple of 128) dividing the aligned prefix.
        lanes = 128
        for w in (2048, 1024, 512, 256, 128):
            if n_main % w == 0:
                lanes = w
                break
        rows = n_main // lanes
        out2d = _qcfs_pallas_2d(x_main.reshape(rows, lanes), scales, T)
        out_main = out2d.reshape(-1)

    if tail:
        # <128-element ragged tail: plain jnp (negligible, avoids a full-array
        # pad + un-pad HBM pass).
        x_tail = xf[n_main:].astype(jnp.float32)
        y = jnp.floor(x_tail * scales[0] + jnp.float32(0.5))
        y = jnp.clip(y, jnp.float32(0.0), t)
        out_tail = (y * scales[1]).astype(dtype)
        out = out_tail if out_main is None else jnp.concatenate([out_main, out_tail])
    else:
        out = out_main

    return out.reshape(orig_shape)


def qcfs_reference(x, v_threshold, T):
    xf = x.astype(jnp.float32)
    y = jnp.floor(xf * T / v_threshold + 0.5)
    y = jnp.clip(y, 0.0, float(T))
    return (y * v_threshold / T).astype(x.dtype)


if __name__ == "__main__":
    key = jax.random.PRNGKey(0)
    # Small NCHW input consistent with a conv-activation usage of QCFS.
    x = jax.random.normal(key, (2, 4, 16, 16), dtype=jnp.float32) * 2.0

    T = 4
    # Deterministic parameter init, matching nn.Parameter(torch.tensor(float(T))).
    v_threshold = jnp.float32(float(T))

    out = qcfs_forward(x, v_threshold, T)
    out = jax.block_until_ready(out)

    ref = qcfs_reference(x, v_threshold, T)
    assert out.shape == x.shape and out.dtype == x.dtype
    assert jnp.max(jnp.abs(out.astype(jnp.float32) - ref.astype(jnp.float32))) < 1e-6

    # TODO(synk): backward straight-through-estimator (floor_ste grad and the
    # v_threshold gradient) is not implemented; forward pass only. A
    # jax.custom_vjp wrapper would be required for training use.

    print("KERNEL_OK")
</pallas_src>

<mosaic_0001>
module attributes {stable_mosaic.version = 11 : i64} {
  func.func @_lambda_(%arg0: i32, %arg1: memref<2xf32, #tpu.memory_space<smem>>, %arg2: memref<1x2048xf32, #tpu.memory_space<vmem>>, %arg3: memref<1x2048xf32, #tpu.memory_space<vmem>>) attributes {dimension_semantics = [#tpu.dimension_semantics<parallel>], iteration_bounds = array<i64: 1>, scalar_prefetch = 0 : i64, scratch_operands = 0 : i64, tpu.core_type = #tpu.core_type<tc>, window_params = [{transform_indices = @transform_0, window_bounds = array<i64: 2>}, {transform_indices = @transform_1, window_bounds = array<i64: 1, 2048>}, {transform_indices = @transform_2, window_bounds = array<i64: 1, 2048>}]} {
    %c0 = arith.constant 0 : index
    %0 = memref.load %arg1[%c0] : memref<2xf32, #tpu.memory_space<smem>>
    %c1 = arith.constant 1 : index
    %1 = memref.load %arg1[%c1] : memref<2xf32, #tpu.memory_space<smem>>
    %c0_0 = arith.constant 0 : index
    %c0_1 = arith.constant 0 : index
    %2 = vector.load %arg2[%c0_0, %c0_1] : memref<1x2048xf32, #tpu.memory_space<vmem>>, vector<1x2048xf32>
    %3 = vector.broadcast %0 : f32 to vector<1x2048xf32>
    %4 = arith.mulf %2, %3 : vector<1x2048xf32>
    %cst = arith.constant 5.000000e-01 : f32
    %5 = vector.broadcast %cst : f32 to vector<1x2048xf32>
    %6 = arith.addf %4, %5 : vector<1x2048xf32>
    %7 = math.floor %6 : vector<1x2048xf32>
    %cst_2 = arith.constant 0.000000e+00 : f32
    %cst_3 = arith.constant 4.000000e+00 : f32
    %8 = vector.broadcast %cst_2 : f32 to vector<1x2048xf32>
    %9 = arith.maximumf %8, %7 : vector<1x2048xf32>
    %10 = vector.broadcast %cst_3 : f32 to vector<1x2048xf32>
    %11 = arith.minimumf %10, %9 : vector<1x2048xf32>
    %12 = vector.broadcast %1 : f32 to vector<1x2048xf32>
    %13 = arith.mulf %11, %12 : vector<1x2048xf32>
    %c0_4 = arith.constant 0 : index
    %c0_5 = arith.constant 0 : index
    %14 = vector.load %arg3[%c0_4, %c0_5] : memref<1x2048xf32, #tpu.memory_space<vmem>>, vector<1x2048xf32>
    tpu.vector_store %arg3[%c0_4, %c0_5], %13 {strides = array<i32>} : memref<1x2048xf32, #tpu.memory_space<vmem>>, vector<1x2048xf32>,
    return
  }
  func.func @transform_0(%arg0: i32) -> i32 {
    %c0_i32 = arith.constant 0 : i32
    %c0_i32_0 = arith.constant 0 : i32
    return %c0_i32 : i32
  }
  func.func @transform_1(%arg0: i32) -> (i32, i32) {
    %c0_i32 = arith.constant 0 : i32
    %c0_i32_0 = arith.constant 0 : i32
    return %arg0, %c0_i32 : i32, i32
  }
  func.func @transform_2(%arg0: i32) -> (i32, i32) {
    %c0_i32 = arith.constant 0 : i32
    %c0_i32_0 = arith.constant 0 : i32
    return %arg0, %c0_i32 : i32, i32
  }
}

</mosaic_0001>

<llo_original>
// kernel: tpu_custom_call.1
$region0: #{tpu_custom_call.1}
  #allocation0 [shape = 'u32[]', space=smem, size = 0x4, offset = 0x4, fixed_abs, tag = 'smem constant byte address 0x4 - core index']
  #allocation1 [shape = 'u32[144,128]{1,0:T(1,128)}', space=vmem, size = 0x12000, scoped, tag = 'internal scratch']
  %s0 = inlined_call_operand.hbm [shape: f32[2], index: 0, kind: input, shape index: {}]
  %s1 = inlined_call_operand.hbm [shape: f32[1,2048], index: 1, kind: input, shape index: {}]
  %s2 = inlined_call_operand.hbm [shape: f32[1,2048], index: 2, kind: output, shape index: {}]
  %s3 = sld [smem:[#allocation0]]
  $region26: #{tpu_custom_call.1} parent=0
    _
  %s5 = ssub.s32 1, %s3
  %s6 = scalar_select 0, %s5, %s3
  $region1: #{tpu_custom_call.1} parent=0
    #allocation2 [shape = 'u8[512]{0}', space=smem, size = 0x200, scoped, tag = 'input window, operand 0, single buffered']
    #allocation3 [shape = 's32[1]{0}', space=sflag, size = 0x4, scoped, tag = 'scoped memory for tpu_custom_call.1']
    #allocation4 [shape = 's32[1]{0}', space=sflag, size = 0x4, scoped, tag = 'scoped memory for tpu_custom_call.1']
    #allocation5 [shape = 's32[1]{0}', space=sflag, size = 0x4, scoped, tag = 'scoped memory for tpu_custom_call.1']
    #allocation6 [shape = 'u8[8192]{0}', space=vmem, size = 0x2000, scoped, tag = 'input window, operand 1, single buffered']
    #allocation7 [shape = 'u8[8192]{0}', space=vmem, size = 0x2000, scoped, tag = 'output window, operand 0, single buffered']
    %7 = vsyncpa [#allocation5], 0
    %8 = vsyncpa [#allocation3], 0
    %9 = vsyncpa [#allocation4], 0
    // Predicated region
    $region2: #{tpu_custom_call.1} parent=1 // pred_check
      _
    $region3: #{tpu_custom_call.1} parent=1 // pred_check_branch
      %11 = sbr.rel (0) target = $region5
    $region4: #{tpu_custom_call.1} parent=1 // pred_region
      %s13 = ssub.s32 16, 16
      %14 = vsyncadd [#allocation5], %s13
      %17 = dma.hbm_to_smem %s0, 16, [#allocation2], [#allocation5]
    $region5: #{tpu_custom_call.1} parent=1 // pred_fallthru
      _
    // Predicated region
    $region6: #{tpu_custom_call.1} parent=1 // pred_check
      _
    $region7: #{tpu_custom_call.1} parent=1 // pred_check_branch
      %19 = sbr.rel (0) target = $region9
    $region8: #{tpu_custom_call.1} parent=1 // pred_region
      %s21 = ssub.s32 256, 256
      %22 = vsyncadd [#allocation3], %s21
      %s24 = sshll.u32 [#allocation6], 4
      %s25 = int_to_ptr.vmem [resolvable:$true] %s24
      %27 = dma.hbm_to_vmem [thread:$0]  %s1, 256, %s25, [#allocation3]
    $region9: #{tpu_custom_call.1} parent=1 // pred_fallthru
      _
    // Predicated region
    $region10: #{tpu_custom_call.1} parent=1 // pred_check
      _
    $region11: #{tpu_custom_call.1} parent=1 // pred_check_branch
      %29 = sbr.rel (0) target = $region13
    $region12: #{tpu_custom_call.1} parent=1 // pred_region
      %30 = dma.done [#allocation5], 16
    $region13: #{tpu_custom_call.1} parent=1 // pred_fallthru
      _
    // Predicated region
    $region14: #{tpu_custom_call.1} parent=1 // pred_check
      _
    $region15: #{tpu_custom_call.1} parent=1 // pred_check_branch
      %32 = sbr.rel (0) target = $region17
    $region16: #{tpu_custom_call.1} parent=1 // pred_region
      %33 = dma.done [#allocation3], 256
    $region17: #{tpu_custom_call.1} parent=1 // pred_fallthru
      _
    %34 = sfence
    %s35 = sld [smem:[#allocation2]]
    %s36 = sld [smem:[#allocation2 + $0x1]]
    %v37 = vld [vmem:[#allocation6] sm:$0xff]
    %v38 = vld [vmem:[#allocation6 + $0x8] sm:$0xff]
    %v39 = vstv %s35
    %v40 = vmul.f32 %v37, %v39
    %v41 = vmul.f32 %v38, %v39
    %v42 = vadd.f32 %v40, 0.5
    %v43 = vadd.f32 %v41, 0.5
    %v44 = vfloor.f32 %v42
    %v45 = vfloor.f32 %v43
    %v46 = vmax.f32 %v44, 0.0
    %v47 = vmax.f32 %v45, 0.0
    %v48 = vmin.f32 %v46, 4.0
    %v49 = vmin.f32 %v47, 4.0
    %v50 = vstv %s36
    %v51 = vmul.f32 %v48, %v50
    %v52 = vmul.f32 %v49, %v50
    %53 = vst [vmem:[#allocation7] sm:$0xff] %v51
    %54 = vst [vmem:[#allocation7 + $0x8] sm:$0xff] %v52
    // Predicated region
    $region18: #{tpu_custom_call.1} parent=1 // pred_check
      _
    $region19: #{tpu_custom_call.1} parent=1 // pred_check_branch
      %56 = sbr.rel (0) target = $region21
    $region20: #{tpu_custom_call.1} parent=1 // pred_region
      %s58 = ssub.s32 256, 256
      %59 = vsyncadd [#allocation4], %s58
      %s61 = sshll.u32 [#allocation7], 4
      %s62 = int_to_ptr.vmem [resolvable:$true] %s61
      %64 = dma.vmem_to_hbm [thread:$0]  %s62, 256, %s2, [#allocation4]
    $region21: #{tpu_custom_call.1} parent=1 // pred_fallthru
      _
    // Predicated region
    $region22: #{tpu_custom_call.1} parent=1 // pred_check
      _
    $region23: #{tpu_custom_call.1} parent=1 // pred_check_branch
      %66 = sbr.rel (0) target = $region25
    $region24: #{tpu_custom_call.1} parent=1 // pred_region
      %67 = dma.done [#allocation4], 256
    $region25: #{tpu_custom_call.1} parent=1 // pred_fallthru
      _
    %68 = vsyncpa [#allocation3], 1
    %69 = vsyncpa [#allocation4], 1
    %70 = vsyncpa [#allocation5], 1

</llo_original>
